<compile_context>
chip_gen: v5e
topology: v5e:2x2
jax: 0.10.0
libtpu: 0.0.40
codegen_flags: <defaults>
</compile_context>

<pallas_src>
import functools
import math

import jax
import jax.numpy as jnp
from jax import lax
from jax.experimental import pallas as pl
from jax.experimental.pallas import tpu as pltpu


def _round_up(x, m):
    return (x + m - 1) // m * m


def _pick_tile(dim, candidates):
    for c in candidates:
        if dim >= c and dim % c == 0:
            return c
    return dim  # small case: full extent (always legal as a block dim)


# ----------------------------------------------------------------------------------
# Kernel 1: linear projection  y = x @ W^T + b   (W in PyTorch nn.Linear [out, in] layout)
# ----------------------------------------------------------------------------------
def _linear_kernel(x_ref, w_ref, b_ref, o_ref):
    # x_ref: (tm, H), w_ref: (tn, H), b_ref: (1, tn), o_ref: (tm, tn)
    acc = lax.dot_general(
        x_ref[...], w_ref[...],
        dimension_numbers=(((1,), (1,)), ((), ())),   # contract H with H (transposed RHS)
        preferred_element_type=jnp.float32,
    )
    o_ref[...] = (acc + b_ref[...]).astype(o_ref.dtype)


def linear_projection(x2d, weight, bias, *, tm_target=256, tn_candidates=(512, 256, 128)):
    """x2d: [M, H]; weight: [N, H]; bias: [N] -> [M, N]."""
    M, H = x2d.shape
    N = weight.shape[0]

    # Row tile: big enough to fill the MXU M-dimension; pad M so the tile divides it.
    tm = min(tm_target, _round_up(M, 8))
    Mp = _round_up(M, tm)
    if Mp != M:
        x2d = jnp.pad(x2d, ((0, Mp - M), (0, 0)))

    # Output-feature tile: lane-dense multiple of 128 when N allows it.
    tn = _pick_tile(N, tn_candidates)

    b2d = bias.reshape(1, N)

    cost = pl.CostEstimate(
        flops=2 * Mp * H * N,
        transcendentals=0,
        bytes_accessed=int(x2d.dtype.itemsize) * (Mp * H + N * H + N + Mp * N),
    )

    out2d = pl.pallas_call(
        _linear_kernel,
        out_shape=jax.ShapeDtypeStruct((Mp, N), x2d.dtype),
        grid_spec=pltpu.PrefetchScalarGridSpec(
            num_scalar_prefetch=0,
            grid=(Mp // tm, N // tn),
            in_specs=[
                pl.BlockSpec((tm, H), lambda i, j: (i, 0)),   # activation row tile
                pl.BlockSpec((tn, H), lambda i, j: (j, 0)),   # weight column tile (no transpose)
                pl.BlockSpec((1, tn), lambda i, j: (0, j)),   # bias tile
            ],
            out_specs=pl.BlockSpec((tm, tn), lambda i, j: (i, j)),
        ),
        compiler_params=pltpu.CompilerParams(
            dimension_semantics=("parallel", "parallel"),
        ),
        cost_estimate=cost,
    )(x2d, weight, b2d)

    return out2d[:M] if Mp != M else out2d


# ----------------------------------------------------------------------------------
# Kernel 2: per-(batch, head) scaled-dot-product attention with additive mask
# ----------------------------------------------------------------------------------
def _attention_kernel(q_ref, k_ref, v_ref, mask_ref, o_ref, *, scale):
    q = q_ref[0, 0]          # (tq, hd)
    k = k_ref[0, 0]          # (S,  hd)
    v = v_ref[0, 0]          # (S,  hd)

    scores = lax.dot_general(
        q, k,
        dimension_numbers=(((1,), (1,)), ((), ())),   # q @ k^T
        preferred_element_type=jnp.float32,
    ) * scale
    scores = scores + mask_ref[0, 0]                  # (1, S) additive mask, broadcasts

    m = jnp.max(scores, axis=-1, keepdims=True)
    p = jnp.exp(scores - m)
    denom = jnp.sum(p, axis=-1, keepdims=True)
    probs = p / denom
    # TODO(synk): attention-probs dropout and head_mask are identity here (eval path).

    ctx = jnp.dot(probs.astype(v.dtype), v, preferred_element_type=jnp.float32)
    o_ref[0, 0] = ctx.astype(o_ref.dtype)


def multihead_attention(q, k, v, mask, *, scale, tq_target=256):
    """q,k,v: [B, NH, S, HD]; mask: [B, 1, 1, S] additive -> context [B, NH, S, HD]."""
    B, NH, S, HD = q.shape
    tq = min(tq_target, S)
    if S % tq != 0:
        tq = S

    cost = pl.CostEstimate(
        flops=4 * B * NH * S * S * HD,                 # QK^T + PV
        transcendentals=B * NH * S * S,                # exp
        bytes_accessed=int(q.dtype.itemsize) * (4 * B * NH * S * HD + B * S),
    )

    return pl.pallas_call(
        functools.partial(_attention_kernel, scale=scale),
        out_shape=jax.ShapeDtypeStruct((B, NH, S, HD), q.dtype),
        grid_spec=pltpu.PrefetchScalarGridSpec(
            num_scalar_prefetch=0,
            grid=(B, NH, S // tq),
            in_specs=[
                pl.BlockSpec((1, 1, tq, HD), lambda b, h, qi: (b, h, qi, 0)),  # Q tile
                pl.BlockSpec((1, 1, S, HD),  lambda b, h, qi: (b, h, 0, 0)),   # full K per head
                pl.BlockSpec((1, 1, S, HD),  lambda b, h, qi: (b, h, 0, 0)),   # full V per head
                pl.BlockSpec((1, 1, 1, S),   lambda b, h, qi: (b, 0, 0, 0)),   # additive mask
            ],
            out_specs=pl.BlockSpec((1, 1, tq, HD), lambda b, h, qi: (b, h, qi, 0)),
        ),
        compiler_params=pltpu.CompilerParams(
            dimension_semantics=("parallel", "parallel", "parallel"),
        ),
        cost_estimate=cost,
    )(q, k, v, mask)


# ----------------------------------------------------------------------------------
# Module wrapper (forward of Bert2DSelfAttention, self-attention / eval path)
# ----------------------------------------------------------------------------------
def bert2d_self_attention(hidden_states, wq, bq, wk, bk, wv, bv,
                          attention_mask=None, *, num_attention_heads):
    B, S, H = hidden_states.shape
    assert H % num_attention_heads == 0
    hd = H // num_attention_heads
    scale = 1.0 / math.sqrt(hd)

    x2d = hidden_states.reshape(B * S, H)
    q = linear_projection(x2d, wq, bq)
    k = linear_projection(x2d, wk, bk)
    v = linear_projection(x2d, wv, bv)

    def split_heads(t):
        return t.reshape(B, S, num_attention_heads, hd).transpose(0, 2, 1, 3)

    q4, k4, v4 = split_heads(q), split_heads(k), split_heads(v)

    if attention_mask is None:
        attention_mask = jnp.zeros((B, 1, 1, S), dtype=jnp.float32)
    attention_mask = attention_mask.astype(jnp.float32)

    ctx = multihead_attention(q4, k4, v4, attention_mask, scale=scale)
    return ctx.transpose(0, 2, 1, 3).reshape(B, S, H)


# ----------------------------------------------------------------------------------
# Pure-JAX reference
# ----------------------------------------------------------------------------------
def _reference(hidden_states, wq, bq, wk, bk, wv, bv, mask, num_heads):
    B, S, H = hidden_states.shape
    hd = H // num_heads
    prec = lax.Precision.HIGHEST

    def lin(w, b):
        return jnp.einsum("bsh,oh->bso", hidden_states, w, precision=prec) + b

    def heads(t):
        return t.reshape(B, S, num_heads, hd).transpose(0, 2, 1, 3)

    q, k, v = heads(lin(wq, bq)), heads(lin(wk, bk)), heads(lin(wv, bv))
    scores = jnp.einsum("bhqd,bhkd->bhqk", q, k, precision=prec) / math.sqrt(hd)
    scores = scores + mask
    probs = jax.nn.softmax(scores, axis=-1)
    ctx = jnp.einsum("bhqk,bhkd->bhqd", probs, v, precision=prec)
    return ctx.transpose(0, 2, 1, 3).reshape(B, S, H)


if __name__ == "__main__":
    # Small synthetic config: hidden_size=32, num_attention_heads=4 -> head_size=8
    B, S, H, NH = 2, 8, 32, 4

    key = jax.random.PRNGKey(0)
    kx, kq, kk, kv, kbq, kbk, kbv = jax.random.split(key, 7)
    hidden_states = jax.random.normal(kx, (B, S, H), dtype=jnp.float32)
    wq = jax.random.normal(kq, (H, H), dtype=jnp.float32) * 0.05   # nn.Linear [out, in]
    wk = jax.random.normal(kk, (H, H), dtype=jnp.float32) * 0.05
    wv = jax.random.normal(kv, (H, H), dtype=jnp.float32) * 0.05
    bq = jax.random.normal(kbq, (H,), dtype=jnp.float32) * 0.02
    bk = jax.random.normal(kbk, (H,), dtype=jnp.float32) * 0.02
    bv = jax.random.normal(kbv, (H,), dtype=jnp.float32) * 0.02

    # HF-style extended additive attention mask [B, 1, 1, S]: 0 keep, -10000 masked.
    lengths = jnp.array([S, S - 2])
    pos = jnp.arange(S)[None, :]
    mask = jnp.where(pos < lengths[:, None], 0.0, -10000.0).astype(jnp.float32)
    mask = mask.reshape(B, 1, 1, S)

    out = bert2d_self_attention(hidden_states, wq, bq, wk, bk, wv, bv, mask,
                                num_attention_heads=NH)
    out = jax.block_until_ready(out)

    ref = _reference(hidden_states, wq, bq, wk, bk, wv, bv, mask, NH)
    assert out.shape == (B, S, H)
    assert jnp.allclose(out, ref, atol=2e-5, rtol=2e-5), "mismatch vs reference"

    print("KERNEL_OK")
</pallas_src>

<mosaic_0001>
module attributes {stable_mosaic.version = 11 : i64} {
  func.func @_linear_kernel(%arg0: i32, %arg1: i32, %arg2: memref<16x32xf32, #tpu.memory_space<vmem>>, %arg3: memref<32x32xf32, #tpu.memory_space<vmem>>, %arg4: memref<1x32xf32, #tpu.memory_space<vmem>>, %arg5: memref<16x32xf32, #tpu.memory_space<vmem>>) attributes {dimension_semantics = [#tpu.dimension_semantics<parallel>, #tpu.dimension_semantics<parallel>], iteration_bounds = array<i64: 1, 1>, scalar_prefetch = 0 : i64, scratch_operands = 0 : i64, tpu.core_type = #tpu.core_type<tc>, window_params = [{transform_indices = @transform_0, window_bounds = array<i64: 16, 32>}, {transform_indices = @transform_1, window_bounds = array<i64: 32, 32>}, {transform_indices = @transform_2, window_bounds = array<i64: 1, 32>}, {transform_indices = @transform_3, window_bounds = array<i64: 16, 32>}]} {
    %c0 = arith.constant 0 : index
    %c0_0 = arith.constant 0 : index
    %0 = vector.load %arg2[%c0, %c0_0] : memref<16x32xf32, #tpu.memory_space<vmem>>, vector<16x32xf32>
    %c0_1 = arith.constant 0 : index
    %c0_2 = arith.constant 0 : index
    %1 = vector.load %arg3[%c0_1, %c0_2] : memref<32x32xf32, #tpu.memory_space<vmem>>, vector<32x32xf32>
    %cst = arith.constant dense<0.000000e+00> : vector<16x32xf32>
    %2 = tpu.matmul %0, %1, %cst {dimension_numbers = #tpu.dot_dimension_numbers<[1], [1], [0], [0], [0, 0, 1, 0], [], []>} : vector<16x32xf32>, vector<32x32xf32>, vector<16x32xf32> -> vector<16x32xf32>
    %c0_3 = arith.constant 0 : index
    %c0_4 = arith.constant 0 : index
    %3 = vector.load %arg4[%c0_3, %c0_4] : memref<1x32xf32, #tpu.memory_space<vmem>>, vector<1x32xf32>
    %4 = vector.broadcast %3 : vector<1x32xf32> to vector<16x32xf32>
    %5 = arith.addf %2, %4 : vector<16x32xf32>
    %c0_5 = arith.constant 0 : index
    %c0_6 = arith.constant 0 : index
    %6 = vector.load %arg5[%c0_5, %c0_6] : memref<16x32xf32, #tpu.memory_space<vmem>>, vector<16x32xf32>
    tpu.vector_store %arg5[%c0_5, %c0_6], %5 {strides = array<i32>} : memref<16x32xf32, #tpu.memory_space<vmem>>, vector<16x32xf32>,
    return
  }
  func.func @transform_0(%arg0: i32, %arg1: i32) -> (i32, i32) {
    %c0_i32 = arith.constant 0 : i32
    %c0_i32_0 = arith.constant 0 : i32
    return %arg0, %c0_i32 : i32, i32
  }
  func.func @transform_1(%arg0: i32, %arg1: i32) -> (i32, i32) {
    %c0_i32 = arith.constant 0 : i32
    %c0_i32_0 = arith.constant 0 : i32
    return %arg1, %c0_i32 : i32, i32
  }
  func.func @transform_2(%arg0: i32, %arg1: i32) -> (i32, i32) {
    %c0_i32 = arith.constant 0 : i32
    %c0_i32_0 = arith.constant 0 : i32
    return %c0_i32, %arg1 : i32, i32
  }
  func.func @transform_3(%arg0: i32, %arg1: i32) -> (i32, i32) {
    %c0_i32 = arith.constant 0 : i32
    return %arg0, %arg1 : i32, i32
  }
}

</mosaic_0001>

<llo_original>
// kernel: tpu_custom_call.1
$region0: #{tpu_custom_call.1}
  #allocation0 [shape = 'u32[]', space=smem, size = 0x4, offset = 0x4, fixed_abs, tag = 'smem constant byte address 0x4 - core index']
  #allocation1 [shape = 'u32[72,128]{1,0:T(1,128)}', space=vmem, size = 0x9000, scoped, tag = 'internal scratch']
  %s0 = inlined_call_operand.hbm [shape: f32[16,32], index: 0, kind: input, shape index: {}]
  %s1 = inlined_call_operand.hbm [shape: f32[32,32], index: 1, kind: input, shape index: {}]
  %s2 = inlined_call_operand.vmem [shape: f32[1,32], index: 2, kind: input, shape index: {}]
  %s3 = inlined_call_operand.hbm [shape: f32[16,32], index: 3, kind: output, shape index: {}]
  %s4 = sld [smem:[#allocation0]]
  $region30: #{tpu_custom_call.1} parent=0
    _
  %s6 = ssub.s32 1, %s4
  %s7 = scalar_select 0, %s6, %s4
  $region1: #{tpu_custom_call.1} parent=0
    #allocation2 [shape = 'u8[8192]{0}', space=vmem, size = 0x2000, scoped, tag = 'input window, operand 0, single buffered']
    #allocation3 [shape = 's32[1]{0}', space=sflag, size = 0x4, scoped, tag = 'scoped memory for tpu_custom_call.1']
    #allocation4 [shape = 's32[1]{0}', space=sflag, size = 0x4, scoped, tag = 'scoped memory for tpu_custom_call.1']
    #allocation5 [shape = 'u8[16384]{0}', space=vmem, size = 0x4000, scoped, tag = 'input window, operand 1, single buffered']
    #allocation6 [shape = 's32[1]{0}', space=sflag, size = 0x4, scoped, tag = 'scoped memory for tpu_custom_call.1']
    #allocation7 [shape = 'u8[8192]{0}', space=vmem, size = 0x2000, scoped, tag = 'output window, operand 0, single buffered']
    %8 = vsyncpa [#allocation3], 0
    %9 = vsyncpa [#allocation6], 0
    %10 = vsyncpa [#allocation4], 0
    // Predicated region
    $region2: #{tpu_custom_call.1} parent=1 // pred_check
      _
    $region3: #{tpu_custom_call.1} parent=1 // pred_check_branch
      %12 = sbr.rel (0) target = $region5
    $region4: #{tpu_custom_call.1} parent=1 // pred_region
      %14 = vsyncadd [#allocation3], 0
      %s15 = sshll.u32 %s0, 4
      %s16 = int_to_ptr.hbm [resolvable:$true] %s15
      %s17 = sshll.u32 [#allocation2], 4
      %s18 = int_to_ptr.vmem [resolvable:$true] %s17
      %23 = dma.hbm_to_vmem [thread:$0]  %s16, 256, %s18, [#allocation3], 128, 128, 8
    $region5: #{tpu_custom_call.1} parent=1 // pred_fallthru
      _
    // Predicated region
    $region6: #{tpu_custom_call.1} parent=1 // pred_check
      _
    $region7: #{tpu_custom_call.1} parent=1 // pred_check_branch
      %25 = sbr.rel (0) target = $region9
    $region8: #{tpu_custom_call.1} parent=1 // pred_region
      %27 = vsyncadd [#allocation6], 0
      %s28 = sshll.u32 %s1, 4
      %s29 = int_to_ptr.hbm [resolvable:$true] %s28
      %s30 = sshll.u32 [#allocation5], 4
      %s31 = int_to_ptr.vmem [resolvable:$true] %s30
      %36 = dma.hbm_to_vmem [thread:$0]  %s29, 512, %s31, [#allocation6], 128, 128, 8
    $region9: #{tpu_custom_call.1} parent=1 // pred_fallthru
      _
    // Predicated region
    $region10: #{tpu_custom_call.1} parent=1 // pred_check
      _
    $region11: #{tpu_custom_call.1} parent=1 // pred_check_branch
      %38 = sbr.rel (0) target = $region13
    $region12: #{tpu_custom_call.1} parent=1 // pred_region
      _
    $region13: #{tpu_custom_call.1} parent=1 // pred_fallthru
      _
    // Predicated region
    $region14: #{tpu_custom_call.1} parent=1 // pred_check
      _
    $region15: #{tpu_custom_call.1} parent=1 // pred_check_branch
      %40 = sbr.rel (0) target = $region17
    $region16: #{tpu_custom_call.1} parent=1 // pred_region
      %42 = dma.done [#allocation3], 256
    $region17: #{tpu_custom_call.1} parent=1 // pred_fallthru
      _
    // Predicated region
    $region18: #{tpu_custom_call.1} parent=1 // pred_check
      _
    $region19: #{tpu_custom_call.1} parent=1 // pred_check_branch
      %44 = sbr.rel (0) target = $region21
    $region20: #{tpu_custom_call.1} parent=1 // pred_region
      %46 = dma.done [#allocation6], 512
    $region21: #{tpu_custom_call.1} parent=1 // pred_fallthru
      _
    %v47 = vld [vmem:[#allocation2] sm:$0xff]
    %v48 = vld [vmem:[#allocation2 + $0x8] sm:$0xff]
    %v49 = vld [vmem:[#allocation5] sm:$0xff]
    %v50 = vld [vmem:[#allocation5 + $0x8] sm:$0xff]
    %v51 = vld [vmem:[#allocation5 + $0x10] sm:$0xff]
    %v52 = vld [vmem:[#allocation5 + $0x18] sm:$0xff]
    %v53 = vld [vmem:[%s2] sm:$0x1]
    %v55 = vperm.slane %v53, 0
    %vm57 = vcmask 261120
    %v59 = vsel %vm57, %v47, 0
    %v62 = vsel %vm57, %v48, 0
    %v65 = vsel %vm57, %v49, 0
    %v68 = vsel %vm57, %v50, 0
    %v71 = vsel %vm57, %v51, 0
    %v74 = vsel %vm57, %v52, 0
    %76 = vmatpush.xpose.msra.mxu0 0.0
    %77 = vmatpush.xpose.msra.mxu0 0.0
    %78 = vmatpush.xpose.msra.mxu0 0.0
    %79 = vmatpush.xpose.msra.mxu0 0.0
    %80 = vmatpush.xpose.msra.mxu0 0.0
    %81 = vmatpush.xpose.msra.mxu0 0.0
    %82 = vmatpush.xpose.msra.mxu0 0.0
    %83 = vmatpush.xpose.msra.mxu0 0.0
    %84 = vmatpush.xpose.msra.mxu0 0.0
    %85 = vmatpush.xpose.msra.mxu0 0.0
    %86 = vmatpush.xpose.msra.mxu0 0.0
    %87 = vmatpush.xpose.msra.mxu0 0.0
    %88 = vmatpush.xpose.msra.mxu0 %v74
    %89 = vmatpush.xpose.msra.mxu0 %v71
    %90 = vmatpush.xpose.msra.mxu0 %v68
    %91 = vmatpush.xpose.msra.mxu0 %v65
    %92 = vmatmul.f32.gmra.mxu0 %v59
    %v93 = vpop.f32.mrf.mxu0
    %v94 = vadd.f32 %v55, %v93
    %95 = vmatmul.f32.gmra.mxu0 %v62
    %v96 = vpop.f32.mrf.mxu0
    %v97 = vadd.f32 %v55, %v96
    %98 = vdwg.mxu0
    %99 = vst.msk [vmem:[#allocation7] sm:$0xff] %vm57, %v94
    %100 = vst.msk [vmem:[#allocation7 + $0x8] sm:$0xff] %vm57, %v97
    // Predicated region
    $region22: #{tpu_custom_call.1} parent=1 // pred_check
      _
    $region23: #{tpu_custom_call.1} parent=1 // pred_check_branch
      %102 = sbr.rel (0) target = $region25
    $region24: #{tpu_custom_call.1} parent=1 // pred_region
      %104 = vsyncadd [#allocation4], 0
      %s105 = sshll.u32 [#allocation7], 4
      %s106 = int_to_ptr.vmem [resolvable:$true] %s105
      %s107 = sshll.u32 %s3, 4
      %s108 = int_to_ptr.hbm [resolvable:$true] %s107
      %113 = dma.vmem_to_hbm [thread:$0]  %s106, 256, %s108, [#allocation4], 128, 128, 8
    $region25: #{tpu_custom_call.1} parent=1 // pred_fallthru
      _
    // Predicated region
    $region26: #{tpu_custom_call.1} parent=1 // pred_check
      _
    $region27: #{tpu_custom_call.1} parent=1 // pred_check_branch
      %115 = sbr.rel (0) target = $region29
    $region28: #{tpu_custom_call.1} parent=1 // pred_region
      %117 = dma.done [#allocation4], 256
    $region29: #{tpu_custom_call.1} parent=1 // pred_fallthru
      _
    %118 = vsyncpa [#allocation3], 1
    %119 = vsyncpa [#allocation6], 1
    %120 = vsyncpa [#allocation4], 1

</llo_original>
